<compile_context>
chip_gen: v6e
topology: v6e:2x2x1
jax: 0.10.0
libtpu: 0.0.40
codegen_flags: <defaults>
</compile_context>

<pallas_src>
import jax
import jax.numpy as jnp
from jax.experimental import pallas as pl
from jax.experimental.pallas import tpu as pltpu


def _cdiv(a, b):
    return -(-a // b)


def _fused_kernel(uidx_ref, iidx_ref, utab_ref, itab_ref,
                  w1u_ref, w1i_ref, b1_ref, w2_ref, b2_ref, o_ref):
    # uidx_ref/iidx_ref: [T, 1]   int32 batch tiles of user / item indices
    # utab_ref/itab_ref: [NU, E] / [NI, E] bf16 embedding tables (VMEM resident)
    # w1u_ref/w1i_ref  : [E, H]   bf16 (fc1 weight split along its input dim)
    # b1_ref           : [1, H]   f32
    # w2_ref           : [1, H]   bf16 (fc2 weight stored as a row)
    # b2_ref           : [1, 1]   f32 scalar in SMEM
    # o_ref            : [1, T]   f32 lane-dense output (batch on the lane axis)
    T = uidx_ref.shape[0]
    NU = utab_ref.shape[0]
    NI = itab_ref.shape[0]

    # In-kernel embedding gather as a one-hot matmul (exact: weights are 0/1).
    oh_u = jnp.where(
        jax.lax.broadcasted_iota(jnp.int32, (T, NU), 1) == uidx_ref[...],
        1.0, 0.0).astype(jnp.bfloat16)                                     # [T,NU]
    oh_i = jnp.where(
        jax.lax.broadcasted_iota(jnp.int32, (T, NI), 1) == iidx_ref[...],
        1.0, 0.0).astype(jnp.bfloat16)                                     # [T,NI]
    ue = jnp.dot(oh_u, utab_ref[...], preferred_element_type=jnp.float32)  # [T,E]
    ie = jnp.dot(oh_i, itab_ref[...], preferred_element_type=jnp.float32)  # [T,E]

    # fc1 (concat folded into the split weight) + bias + ReLU, f32 accumulate.
    h = (jnp.dot(ue.astype(jnp.bfloat16), w1u_ref[...],
                 preferred_element_type=jnp.float32)
         + jnp.dot(ie.astype(jnp.bfloat16), w1i_ref[...],
                   preferred_element_type=jnp.float32)
         + b1_ref[...])                                                    # [T,H]
    h = jnp.maximum(h, 0.0)                                                # ReLU (f32)

    # fc2 with batch on lanes: (1,H) x (T,H) contracting H -> (1,T) lane-dense.
    # TODO(synk): if a Mosaic dump shows a vxpose of h on the critical path,
    # restructure this dot while keeping the lane-dense (1, T) store.
    o = jax.lax.dot_general(w2_ref[...], h.astype(jnp.bfloat16),
                            (((1,), (1,)), ((), ())),
                            preferred_element_type=jnp.float32)            # [1,T]
    o_ref[...] = o + b2_ref[0, 0]


def prepare_params(params):
    """One-time cast/reshape into kernel-ready layout (hoisted out of forward)."""
    H = params["w1_user"].shape[1]
    return {
        "user_table": params["user_embedding"].astype(jnp.bfloat16),
        "item_table": params["item_embedding"].astype(jnp.bfloat16),
        "w1_user": params["w1_user"].astype(jnp.bfloat16),
        "w1_item": params["w1_item"].astype(jnp.bfloat16),
        "b1": params["b1"].reshape(1, H).astype(jnp.float32),
        "w2": params["w2"].reshape(1, H).astype(jnp.bfloat16),  # (H,1) -> (1,H) row
        "b2": params["b2"].reshape(1, 1).astype(jnp.float32),
    }


def recommendation_nn_forward(prepared, user_indices, item_indices, *, max_tile=2048):
    """Fused forward: in-kernel embedding gather + ReLU MLP -> [B, 1] f32."""
    NU, E = prepared["user_table"].shape
    NI = prepared["item_table"].shape[0]
    H = prepared["w1_user"].shape[1]
    B = user_indices.shape[0]

    # TODO(synk): for production-size tables keep them in HBM (memory_space=pl.ANY)
    # and row-gather with a manual make_async_copy double buffer; this path keeps
    # the (small) tables VMEM-resident across all grid steps.
    assert (NU + NI) * E * 2 <= 8 * 1024 * 1024, "tables too large for VMEM-resident path"

    # Batch tiling: lane-dense output wants a multiple of 128; cap the tile for
    # VMEM, and force >= 2 tiles once B > 128 so v7x megacore uses both TCs.
    nblk = _cdiv(B, 128)
    num_tiles = max(1, _cdiv(nblk, max(1, max_tile // 128)))
    if nblk > 1:
        num_tiles = max(num_tiles, 2)
    T = _cdiv(nblk, num_tiles) * 128
    Bp = num_tiles * T

    # Pad the *indices* (4 B/row) rather than gathered embeddings (~0.5 KB/row).
    uidx = jnp.pad(user_indices.astype(jnp.int32), (0, Bp - B)).reshape(Bp, 1)
    iidx = jnp.pad(item_indices.astype(jnp.int32), (0, Bp - B)).reshape(Bp, 1)

    out = pl.pallas_call(
        _fused_kernel,
        out_shape=jax.ShapeDtypeStruct((1, Bp), jnp.float32),
        grid=(num_tiles,),
        in_specs=[
            pl.BlockSpec((T, 1), lambda i: (i, 0)),              # user idx tile (pipelined)
            pl.BlockSpec((T, 1), lambda i: (i, 0)),              # item idx tile (pipelined)
            pl.BlockSpec((NU, E), lambda i: (0, 0)),             # user table  (VMEM resident)
            pl.BlockSpec((NI, E), lambda i: (0, 0)),             # item table  (VMEM resident)
            pl.BlockSpec((E, H), lambda i: (0, 0)),              # W1[:E]      (VMEM resident)
            pl.BlockSpec((E, H), lambda i: (0, 0)),              # W1[E:]      (VMEM resident)
            pl.BlockSpec((1, H), lambda i: (0, 0)),              # b1          (VMEM resident)
            pl.BlockSpec((1, H), lambda i: (0, 0)),              # W2 row      (VMEM resident)
            pl.BlockSpec(memory_space=pltpu.MemorySpace.SMEM),   # b2 scalar
        ],
        out_specs=pl.BlockSpec((1, T), lambda i: (0, i)),
        compiler_params=pltpu.CompilerParams(
            dimension_semantics=("parallel",)),
    )(uidx, iidx,
      prepared["user_table"], prepared["item_table"],
      prepared["w1_user"], prepared["w1_item"],
      prepared["b1"], prepared["w2"], prepared["b2"])

    return out.reshape(Bp, 1)[:B]


def init_params(key, num_users, num_items, embedding_size=64, hidden_size=128):
    ks = jax.random.split(key, 7)
    in1 = embedding_size * 2
    in2 = hidden_size
    bound1 = 1.0 / jnp.sqrt(in1)
    bound2 = 1.0 / jnp.sqrt(in2)
    return {
        # nn.Embedding default init: N(0, 1)
        "user_embedding": jax.random.normal(ks[0], (num_users, embedding_size), jnp.float32),
        "item_embedding": jax.random.normal(ks[1], (num_items, embedding_size), jnp.float32),
        # nn.Linear default init: U(-1/sqrt(fan_in), 1/sqrt(fan_in)).
        # fc1 weight stored transposed (in, out) and pre-split along its input
        # dim so the kernel never materializes the [B, 2E] concat.
        "w1_user": jax.random.uniform(ks[2], (embedding_size, hidden_size),
                                      jnp.float32, -bound1, bound1),
        "w1_item": jax.random.uniform(ks[3], (embedding_size, hidden_size),
                                      jnp.float32, -bound1, bound1),
        "b1": jax.random.uniform(ks[4], (1, hidden_size), jnp.float32, -bound1, bound1),
        "w2": jax.random.uniform(ks[5], (in2, 1), jnp.float32, -bound2, bound2),
        "b2": jax.random.uniform(ks[6], (1, 1), jnp.float32, -bound2, bound2),
    }


def _reference_forward(params, user_indices, item_indices):
    user_embed = jnp.take(params["user_embedding"], user_indices, axis=0)
    item_embed = jnp.take(params["item_embedding"], item_indices, axis=0)
    h = jnp.maximum(user_embed @ params["w1_user"]
                    + item_embed @ params["w1_item"]
                    + params["b1"], 0.0)
    return h @ params["w2"] + params["b2"]


if __name__ == "__main__":
    key = jax.random.PRNGKey(0)
    num_users, num_items = 32, 48
    embedding_size, hidden_size = 64, 128

    pkey, ukey, ikey = jax.random.split(key, 3)
    params = init_params(pkey, num_users, num_items, embedding_size, hidden_size)
    prepared = prepare_params(params)
    forward = jax.jit(recommendation_nn_forward)

    # Check two batch sizes: tiny (single 128-row tile) and one that exercises
    # the multi-tile (>=2 tiles, padded-index) path used for v7x megacore.
    for batch in (8, 300):
        bkey_u, bkey_i = jax.random.split(jax.random.fold_in(ukey, batch))
        user_indices = jax.random.randint(bkey_u, (batch,), 0, num_users, dtype=jnp.int32)
        item_indices = jax.random.randint(bkey_i, (batch,), 0, num_items, dtype=jnp.int32)

        out = forward(prepared, user_indices, item_indices)
        out = jax.block_until_ready(out)
        assert out.shape == (batch, 1)

        # Pure-JAX f32 reference (tolerance relaxed for the bf16 tables / fc1 / fc2
        # operands inside the kernel; accumulation stays f32).
        ref = _reference_forward(params, user_indices, item_indices)
        assert jnp.allclose(out, ref, atol=3e-2, rtol=3e-2), (
            f"batch={batch}: max abs err {jnp.max(jnp.abs(out - ref))}")

    print("KERNEL_OK")
</pallas_src>

<mosaic_0001>
module attributes {stable_mosaic.version = 11 : i64} {
  func.func @_fused_kernel(%arg0: i32, %arg1: memref<128x1xi32, #tpu.memory_space<vmem>>, %arg2: memref<128x1xi32, #tpu.memory_space<vmem>>, %arg3: memref<32x64xbf16, #tpu.memory_space<vmem>>, %arg4: memref<48x64xbf16, #tpu.memory_space<vmem>>, %arg5: memref<64x128xbf16, #tpu.memory_space<vmem>>, %arg6: memref<64x128xbf16, #tpu.memory_space<vmem>>, %arg7: memref<1x128xf32, #tpu.memory_space<vmem>>, %arg8: memref<1x128xbf16, #tpu.memory_space<vmem>>, %arg9: memref<1x1xf32, #tpu.memory_space<smem>>, %arg10: memref<1x128xf32, #tpu.memory_space<vmem>>) attributes {dimension_semantics = [#tpu.dimension_semantics<parallel>], iteration_bounds = array<i64: 1>, scalar_prefetch = 0 : i64, scratch_operands = 0 : i64, tpu.core_type = #tpu.core_type<tc>, window_params = [{transform_indices = @transform_0, window_bounds = array<i64: 128, 1>}, {transform_indices = @transform_1, window_bounds = array<i64: 128, 1>}, {pipeline_mode = #tpu.pipeline_mode<synchronous>, transform_indices = @transform_2, window_bounds = array<i64: 32, 64>}, {pipeline_mode = #tpu.pipeline_mode<synchronous>, transform_indices = @transform_3, window_bounds = array<i64: 48, 64>}, {pipeline_mode = #tpu.pipeline_mode<synchronous>, transform_indices = @transform_4, window_bounds = array<i64: 64, 128>}, {pipeline_mode = #tpu.pipeline_mode<synchronous>, transform_indices = @transform_5, window_bounds = array<i64: 64, 128>}, {pipeline_mode = #tpu.pipeline_mode<synchronous>, transform_indices = @transform_6, window_bounds = array<i64: 1, 128>}, {pipeline_mode = #tpu.pipeline_mode<synchronous>, transform_indices = @transform_7, window_bounds = array<i64: 1, 128>}, {transform_indices = @transform_8, window_bounds = array<i64: 1, 1>}, {transform_indices = @transform_9, window_bounds = array<i64: 1, 128>}]} {
    %0 = tpu.iota {dimensions = array<i32: 1>} : vector<128x32xi32>
    %c0 = arith.constant 0 : index
    %c0_0 = arith.constant 0 : index
    %1 = vector.load %arg1[%c0, %c0_0] : memref<128x1xi32, #tpu.memory_space<vmem>>, vector<128x1xi32>
    %2 = vector.broadcast %1 : vector<128x1xi32> to vector<128x32xi32>
    %3 = arith.cmpi eq, %0, %2 : vector<128x32xi32>
    %cst = arith.constant 1.000000e+00 : f32
    %cst_1 = arith.constant 0.000000e+00 : f32
    %4 = vector.broadcast %cst : f32 to vector<128x32xf32>
    %5 = vector.broadcast %cst_1 : f32 to vector<128x32xf32>
    %6 = arith.select %3, %4, %5 : vector<128x32xi1>, vector<128x32xf32>
    %7 = arith.truncf %6 : vector<128x32xf32> to vector<128x32xbf16>
    %8 = tpu.iota {dimensions = array<i32: 1>} : vector<128x48xi32>
    %c0_2 = arith.constant 0 : index
    %c0_3 = arith.constant 0 : index
    %9 = vector.load %arg2[%c0_2, %c0_3] : memref<128x1xi32, #tpu.memory_space<vmem>>, vector<128x1xi32>
    %10 = vector.broadcast %9 : vector<128x1xi32> to vector<128x48xi32>
    %11 = arith.cmpi eq, %8, %10 : vector<128x48xi32>
    %cst_4 = arith.constant 1.000000e+00 : f32
    %cst_5 = arith.constant 0.000000e+00 : f32
    %12 = vector.broadcast %cst_4 : f32 to vector<128x48xf32>
    %13 = vector.broadcast %cst_5 : f32 to vector<128x48xf32>
    %14 = arith.select %11, %12, %13 : vector<128x48xi1>, vector<128x48xf32>
    %15 = arith.truncf %14 : vector<128x48xf32> to vector<128x48xbf16>
    %c0_6 = arith.constant 0 : index
    %c0_7 = arith.constant 0 : index
    %16 = vector.load %arg3[%c0_6, %c0_7] : memref<32x64xbf16, #tpu.memory_space<vmem>>, vector<32x64xbf16>
    %cst_8 = arith.constant dense<0.000000e+00> : vector<128x64xf32>
    %17 = tpu.matmul %7, %16, %cst_8 {dimension_numbers = #tpu.dot_dimension_numbers<[1], [0], [0], [1], [0, 0, 1, 1], [], []>} : vector<128x32xbf16>, vector<32x64xbf16>, vector<128x64xf32> -> vector<128x64xf32>
    %c0_9 = arith.constant 0 : index
    %c0_10 = arith.constant 0 : index
    %18 = vector.load %arg4[%c0_9, %c0_10] : memref<48x64xbf16, #tpu.memory_space<vmem>>, vector<48x64xbf16>
    %cst_11 = arith.constant dense<0.000000e+00> : vector<128x64xf32>
    %19 = tpu.matmul %15, %18, %cst_11 {dimension_numbers = #tpu.dot_dimension_numbers<[1], [0], [0], [1], [0, 0, 1, 1], [], []>} : vector<128x48xbf16>, vector<48x64xbf16>, vector<128x64xf32> -> vector<128x64xf32>
    %20 = arith.truncf %17 : vector<128x64xf32> to vector<128x64xbf16>
    %c0_12 = arith.constant 0 : index
    %c0_13 = arith.constant 0 : index
    %21 = vector.load %arg5[%c0_12, %c0_13] : memref<64x128xbf16, #tpu.memory_space<vmem>>, vector<64x128xbf16>
    %cst_14 = arith.constant dense<0.000000e+00> : vector<128x128xf32>
    %22 = tpu.matmul %20, %21, %cst_14 {dimension_numbers = #tpu.dot_dimension_numbers<[1], [0], [0], [1], [0, 0, 1, 1], [], []>} : vector<128x64xbf16>, vector<64x128xbf16>, vector<128x128xf32> -> vector<128x128xf32>
    %23 = arith.truncf %19 : vector<128x64xf32> to vector<128x64xbf16>
    %c0_15 = arith.constant 0 : index
    %c0_16 = arith.constant 0 : index
    %24 = vector.load %arg6[%c0_15, %c0_16] : memref<64x128xbf16, #tpu.memory_space<vmem>>, vector<64x128xbf16>
    %cst_17 = arith.constant dense<0.000000e+00> : vector<128x128xf32>
    %25 = tpu.matmul %23, %24, %cst_17 {dimension_numbers = #tpu.dot_dimension_numbers<[1], [0], [0], [1], [0, 0, 1, 1], [], []>} : vector<128x64xbf16>, vector<64x128xbf16>, vector<128x128xf32> -> vector<128x128xf32>
    %26 = arith.addf %22, %25 : vector<128x128xf32>
    %c0_18 = arith.constant 0 : index
    %c0_19 = arith.constant 0 : index
    %27 = vector.load %arg7[%c0_18, %c0_19] : memref<1x128xf32, #tpu.memory_space<vmem>>, vector<1x128xf32>
    %28 = vector.broadcast %27 : vector<1x128xf32> to vector<128x128xf32>
    %29 = arith.addf %26, %28 : vector<128x128xf32>
    %cst_20 = arith.constant 0.000000e+00 : f32
    %30 = vector.broadcast %cst_20 : f32 to vector<128x128xf32>
    %31 = arith.maximumf %29, %30 : vector<128x128xf32>
    %c0_21 = arith.constant 0 : index
    %c0_22 = arith.constant 0 : index
    %32 = vector.load %arg8[%c0_21, %c0_22] : memref<1x128xbf16, #tpu.memory_space<vmem>>, vector<1x128xbf16>
    %33 = arith.truncf %31 : vector<128x128xf32> to vector<128x128xbf16>
    %cst_23 = arith.constant dense<0.000000e+00> : vector<1x128xf32>
    %34 = tpu.matmul %32, %33, %cst_23 {dimension_numbers = #tpu.dot_dimension_numbers<[1], [1], [0], [0], [0, 0, 1, 0], [], []>} : vector<1x128xbf16>, vector<128x128xbf16>, vector<1x128xf32> -> vector<1x128xf32>
    %c0_24 = arith.constant 0 : index
    %c0_25 = arith.constant 0 : index
    %35 = memref.load %arg9[%c0_24, %c0_25] : memref<1x1xf32, #tpu.memory_space<smem>>
    %36 = vector.broadcast %35 : f32 to vector<1x128xf32>
    %37 = arith.addf %34, %36 : vector<1x128xf32>
    %c0_26 = arith.constant 0 : index
    %c0_27 = arith.constant 0 : index
    %38 = vector.load %arg10[%c0_26, %c0_27] : memref<1x128xf32, #tpu.memory_space<vmem>>, vector<1x128xf32>
    tpu.vector_store %arg10[%c0_26, %c0_27], %37 {strides = array<i32>} : memref<1x128xf32, #tpu.memory_space<vmem>>, vector<1x128xf32>,
    return
  }
  func.func @transform_0(%arg0: i32) -> (i32, i32) {
    %c0_i32 = arith.constant 0 : i32
    %c0_i32_0 = arith.constant 0 : i32
    return %arg0, %c0_i32 : i32, i32
  }
  func.func @transform_1(%arg0: i32) -> (i32, i32) {
    %c0_i32 = arith.constant 0 : i32
    %c0_i32_0 = arith.constant 0 : i32
    return %arg0, %c0_i32 : i32, i32
  }
  func.func @transform_2(%arg0: i32) -> (i32, i32) {
    %c0_i32 = arith.constant 0 : i32
    %c0_i32_0 = arith.constant 0 : i32
    %c0_i32_1 = arith.constant 0 : i32
    return %c0_i32, %c0_i32_0 : i32, i32
  }
  func.func @transform_3(%arg0: i32) -> (i32, i32) {
    %c0_i32 = arith.constant 0 : i32
    %c0_i32_0 = arith.constant 0 : i32
    %c0_i32_1 = arith.constant 0 : i32
    return %c0_i32, %c0_i32_0 : i32, i32
  }
  func.func @transform_4(%arg0: i32) -> (i32, i32) {
    %c0_i32 = arith.constant 0 : i32
    %c0_i32_0 = arith.constant 0 : i32
    %c0_i32_1 = arith.constant 0 : i32
    return %c0_i32, %c0_i32_0 : i32, i32
  }
  func.func @transform_5(%arg0: i32) -> (i32, i32) {
    %c0_i32 = arith.constant 0 : i32
    %c0_i32_0 = arith.constant 0 : i32
    %c0_i32_1 = arith.constant 0 : i32
    return %c0_i32, %c0_i32_0 : i32, i32
  }
  func.func @transform_6(%arg0: i32) -> (i32, i32) {
    %c0_i32 = arith.constant 0 : i32
    %c0_i32_0 = arith.constant 0 : i32
    %c0_i32_1 = arith.constant 0 : i32
    return %c0_i32, %c0_i32_0 : i32, i32
  }
  func.func @transform_7(%arg0: i32) -> (i32, i32) {
    %c0_i32 = arith.constant 0 : i32
    %c0_i32_0 = arith.constant 0 : i32
    %c0_i32_1 = arith.constant 0 : i32
    return %c0_i32, %c0_i32_0 : i32, i32
  }
  func.func @transform_8(%arg0: i32) -> (i32, i32) {
    %c0_i32 = arith.constant 0 : i32
    %c0_i32_0 = arith.constant 0 : i32
    %c0_i32_1 = arith.constant 0 : i32
    return %c0_i32, %c0_i32_0 : i32, i32
  }
  func.func @transform_9(%arg0: i32) -> (i32, i32) {
    %c0_i32 = arith.constant 0 : i32
    %c0_i32_0 = arith.constant 0 : i32
    return %c0_i32, %arg0 : i32, i32
  }
}

</mosaic_0001>

<llo_original>
// kernel: recommendation_nn_forward.1
$region0: #{recommendation_nn_forward.1}
  #allocation0 [shape = 'u32[]', space=smem, size = 0x4, offset = 0x4, fixed_abs, tag = 'smem constant byte address 0x4 - core index']
  #allocation1 [shape = 'u32[144,128]{1,0:T(1,128)}', space=vmem, size = 0x12000, scoped, tag = 'internal scratch']
  #allocation2 [shape = 'f32[1,1]{1,0:T(1,128)S(6)}', space=smem, size = 0x200, scoped, tag = 'scoped memory for recommendation_nn_forward.1']
  %s0 = inlined_call_operand.vmem [shape: s32[128,1], index: 0, kind: input, shape index: {}]
  %s1 = inlined_call_operand.vmem [shape: s32[128,1], index: 1, kind: input, shape index: {}]
  %s2 = inlined_call_operand.vmem [shape: bf16[32,64], index: 2, kind: input, shape index: {}]
  %s3 = inlined_call_operand.vmem [shape: bf16[48,64], index: 3, kind: input, shape index: {}]
  %s4 = inlined_call_operand.vmem [shape: bf16[64,128], index: 4, kind: input, shape index: {}]
  %s5 = inlined_call_operand.vmem [shape: bf16[64,128], index: 5, kind: input, shape index: {}]
  %s6 = inlined_call_operand.vmem [shape: f32[1,128], index: 6, kind: input, shape index: {}]
  %s7 = inlined_call_operand.vmem [shape: bf16[1,128], index: 7, kind: input, shape index: {}]
  %s8 = inlined_call_operand.<no memory space> [shape: f32[1,1], index: 8, kind: input, shape index: {}]
  %s9 = inlined_call_operand.vmem [shape: f32[1,128], index: 9, kind: output, shape index: {}]
  %s10 = sld [smem:[#allocation0]]
  $region46: #{recommendation_nn_forward.1} parent=0
    _
  %s12 = ssub.s32 1, %s10
  %s13 = scalar_select 0, %s12, %s10
  %14 = sst [smem:[#allocation2]] %s8
  // Predicated region
  $region2: #{recommendation_nn_forward.1} parent=0 // pred_check
    _
  $region3: #{recommendation_nn_forward.1} parent=0 // pred_check_branch
    %16 = sbr.rel (0) target = $region5
  $region4: #{recommendation_nn_forward.1} parent=0 // pred_region
    _
  $region5: #{recommendation_nn_forward.1} parent=0 // pred_fallthru
    _
  // Predicated region
  $region6: #{recommendation_nn_forward.1} parent=0 // pred_check
    _
  $region7: #{recommendation_nn_forward.1} parent=0 // pred_check_branch
    %18 = sbr.rel (0) target = $region9
  $region8: #{recommendation_nn_forward.1} parent=0 // pred_region
    _
  $region9: #{recommendation_nn_forward.1} parent=0 // pred_fallthru
    _
  // Predicated region
  $region10: #{recommendation_nn_forward.1} parent=0 // pred_check
    _
  $region11: #{recommendation_nn_forward.1} parent=0 // pred_check_branch
    %20 = sbr.rel (0) target = $region13
  $region12: #{recommendation_nn_forward.1} parent=0 // pred_region
    _
  $region13: #{recommendation_nn_forward.1} parent=0 // pred_fallthru
    _
  // Predicated region
  $region14: #{recommendation_nn_forward.1} parent=0 // pred_check
    _
  $region15: #{recommendation_nn_forward.1} parent=0 // pred_check_branch
    %22 = sbr.rel (0) target = $region17
  $region16: #{recommendation_nn_forward.1} parent=0 // pred_region
    _
  $region17: #{recommendation_nn_forward.1} parent=0 // pred_fallthru
    _
  // Predicated region
  $region18: #{recommendation_nn_forward.1} parent=0 // pred_check
    _
  $region19: #{recommendation_nn_forward.1} parent=0 // pred_check_branch
    %24 = sbr.rel (0) target = $region21
  $region20: #{recommendation_nn_forward.1} parent=0 // pred_region
    _
  $region21: #{recommendation_nn_forward.1} parent=0 // pred_fallthru
    _
  // Predicated region
  $region22: #{recommendation_nn_forward.1} parent=0 // pred_check
    _
  $region23: #{recommendation_nn_forward.1} parent=0 // pred_check_branch
    %26 = sbr.rel (0) target = $region25
  $region24: #{recommendation_nn_forward.1} parent=0 // pred_region
    _
  $region25: #{recommendation_nn_forward.1} parent=0 // pred_fallthru
    _
  // Predicated region
  $region26: #{recommendation_nn_forward.1} parent=0 // pred_check
    _
  $region27: #{recommendation_nn_forward.1} parent=0 // pred_check_branch
    %28 = sbr.rel (0) target = $region29
  $region28: #{recommendation_nn_forward.1} parent=0 // pred_region
    _
  $region29: #{recommendation_nn_forward.1} parent=0 // pred_fallthru
    _
  // Predicated region
  $region30: #{recommendation_nn_forward.1} parent=0 // pred_check
    _
  $region31: #{recommendation_nn_forward.1} parent=0 // pred_check_branch
    %30 = sbr.rel (0) target = $region33
  $region32: #{recommendation_nn_forward.1} parent=0 // pred_region
    _
  $region33: #{recommendation_nn_forward.1} parent=0 // pred_fallthru
    _
  // Predicated region
  $region34: #{recommendation_nn_forward.1} parent=0 // pred_check
    _
  $region35: #{recommendation_nn_forward.1} parent=0 // pred_check_branch
    %32 = sbr.rel (0) target = $region37
  $region36: #{recommendation_nn_forward.1} parent=0 // pred_region
    _
  $region37: #{recommendation_nn_forward.1} parent=0 // pred_fallthru
    _
  %v34 = vlaneseq
  %v35 = vand.u32 %v34, 127
  %v36 = vld [vmem:[%s0] sm:$0xff]
  %v37 = vld [vmem:[%s0 + $0x8] sm:$0xff]
  %v38 = vld [vmem:[%s0 + $0x10] sm:$0xff]
  %v39 = vld [vmem:[%s0 + $0x18] sm:$0xff]
  %v40 = vld [vmem:[%s0 + $0x20] sm:$0xff]
  %v41 = vld [vmem:[%s0 + $0x28] sm:$0xff]
  %v42 = vld [vmem:[%s0 + $0x30] sm:$0xff]
  %v43 = vld [vmem:[%s0 + $0x38] sm:$0xff]
  %v44 = vld [vmem:[%s0 + $0x40] sm:$0xff]
  %v45 = vld [vmem:[%s0 + $0x48] sm:$0xff]
  %v46 = vld [vmem:[%s0 + $0x50] sm:$0xff]
  %v47 = vld [vmem:[%s0 + $0x58] sm:$0xff]
  %v48 = vld [vmem:[%s0 + $0x60] sm:$0xff]
  %v49 = vld [vmem:[%s0 + $0x68] sm:$0xff]
  %v50 = vld [vmem:[%s0 + $0x70] sm:$0xff]
  %v51 = vld [vmem:[%s0 + $0x78] sm:$0xff]
  %52 = vset.pattern.permute.xlu0 0
  %53 = vperm.xlu0 %52, %v36
  %v54 = vpop.permute.xlu0 %53
  %55 = vset.pattern.permute.xlu0 0
  %56 = vperm.xlu0 %55, %v37
  %v57 = vpop.permute.xlu0 %56
  %58 = vset.pattern.permute.xlu0 0
  %59 = vperm.xlu0 %58, %v38
  %v60 = vpop.permute.xlu0 %59
  %61 = vset.pattern.permute.xlu0 0
  %62 = vperm.xlu0 %61, %v39
  %v63 = vpop.permute.xlu0 %62
  %64 = vset.pattern.permute.xlu0 0
  %65 = vperm.xlu0 %64, %v40
  %v66 = vpop.permute.xlu0 %65
  %67 = vset.pattern.permute.xlu0 0
  %68 = vperm.xlu0 %67, %v41
  %v69 = vpop.permute.xlu0 %68
  %70 = vset.pattern.permute.xlu0 0
  %71 = vperm.xlu0 %70, %v42
  %v72 = vpop.permute.xlu0 %71
  %73 = vset.pattern.permute.xlu0 0
  %74 = vperm.xlu0 %73, %v43
  %v75 = vpop.permute.xlu0 %74
  %76 = vset.pattern.permute.xlu0 0
  %77 = vperm.xlu0 %76, %v44
  %v78 = vpop.permute.xlu0 %77
  %79 = vset.pattern.permute.xlu0 0
  %80 = vperm.xlu0 %79, %v45
  %v81 = vpop.permute.xlu0 %80
  %82 = vset.pattern.permute.xlu0 0
  %83 = vperm.xlu0 %82, %v46
  %v84 = vpop.permute.xlu0 %83
  %85 = vset.pattern.permute.xlu0 0
  %86 = vperm.xlu0 %85, %v47
  %v87 = vpop.permute.xlu0 %86
  %88 = vset.pattern.permute.xlu0 0
  %89 = vperm.xlu0 %88, %v48
  %v90 = vpop.permute.xlu0 %89
  %91 = vset.pattern.permute.xlu0 0
  %92 = vperm.xlu0 %91, %v49
  %v93 = vpop.permute.xlu0 %92
  %94 = vset.pattern.permute.xlu0 0
  %95 = vperm.xlu0 %94, %v50
  %v96 = vpop.permute.xlu0 %95
  %97 = vset.pattern.permute.xlu0 0
  %98 = vperm.xlu0 %97, %v51
  %v99 = vpop.permute.xlu0 %98
  %vm100 = vcmp.eq.s32.totalorder %v35, %v54
  %vm101 = vcmp.eq.s32.totalorder %v35, %v57
  %vm102 = vcmp.eq.s32.totalorder %v35, %v60
  %vm103 = vcmp.eq.s32.totalorder %v35, %v63
  %vm104 = vcmp.eq.s32.totalorder %v35, %v66
  %vm105 = vcmp.eq.s32.totalorder %v35, %v69
  %vm106 = vcmp.eq.s32.totalorder %v35, %v72
  %vm107 = vcmp.eq.s32.totalorder %v35, %v75
  %vm108 = vcmp.eq.s32.totalorder %v35, %v78
  %vm109 = vcmp.eq.s32.totalorder %v35, %v81
  %vm110 = vcmp.eq.s32.totalorder %v35, %v84
  %vm111 = vcmp.eq.s32.totalorder %v35, %v87
  %vm112 = vcmp.eq.s32.totalorder %v35, %v90
  %vm113 = vcmp.eq.s32.totalorder %v35, %v93
  %vm114 = vcmp.eq.s32.totalorder %v35, %v96
  %vm115 = vcmp.eq.s32.totalorder %v35, %v99
  %v116 = vsel %vm100, 1.0, 0.0
  %v117 = vsel %vm101, 1.0, 0.0
  %v118 = vsel %vm102, 1.0, 0.0
  %v119 = vsel %vm103, 1.0, 0.0
  %v120 = vsel %vm104, 1.0, 0.0
  %v121 = vsel %vm105, 1.0, 0.0
  %v122 = vsel %vm106, 1.0, 0.0
  %v123 = vsel %vm107, 1.0, 0.0
  %v124 = vsel %vm108, 1.0, 0.0
  %v125 = vsel %vm109, 1.0, 0.0
  %v126 = vsel %vm110, 1.0, 0.0
  %v127 = vsel %vm111, 1.0, 0.0
  %v128 = vsel %vm112, 1.0, 0.0
  %v129 = vsel %vm113, 1.0, 0.0
  %v130 = vsel %vm114, 1.0, 0.0
  %v131 = vsel %vm115, 1.0, 0.0
  %v132 = vpack.c.bf16 %v117, %v116
  %v133 = vpack.c.bf16 %v119, %v118
  %v134 = vpack.c.bf16 %v121, %v120
  %v135 = vpack.c.bf16 %v123, %v122
  %v136 = vpack.c.bf16 %v125, %v124
  %v137 = vpack.c.bf16 %v127, %v126
  %v138 = vpack.c.bf16 %v129, %v128
  %v139 = vpack.c.bf16 %v131, %v130
  %v140 = vld [vmem:[%s1] sm:$0xff]
  %v141 = vld [vmem:[%s1 + $0x8] sm:$0xff]
  %v142 = vld [vmem:[%s1 + $0x10] sm:$0xff]
  %v143 = vld [vmem:[%s1 + $0x18] sm:$0xff]
  %v144 = vld [vmem:[%s1 + $0x20] sm:$0xff]
  %v145 = vld [vmem:[%s1 + $0x28] sm:$0xff]
  %v146 = vld [vmem:[%s1 + $0x30] sm:$0xff]
  %v147 = vld [vmem:[%s1 + $0x38] sm:$0xff]
  %v148 = vld [vmem:[%s1 + $0x40] sm:$0xff]
  %v149 = vld [vmem:[%s1 + $0x48] sm:$0xff]
  %v150 = vld [vmem:[%s1 + $0x50] sm:$0xff]
  %v151 = vld [vmem:[%s1 + $0x58] sm:$0xff]
  %v152 = vld [vmem:[%s1 + $0x60] sm:$0xff]
  %v153 = vld [vmem:[%s1 + $0x68] sm:$0xff]
  %v154 = vld [vmem:[%s1 + $0x70] sm:$0xff]
  %v155 = vld [vmem:[%s1 + $0x78] sm:$0xff]
  %156 = vset.pattern.permute.xlu0 0
  %157 = vperm.xlu0 %156, %v140
  %v158 = vpop.permute.xlu0 %157
  %159 = vset.pattern.permute.xlu0 0
  %160 = vperm.xlu0 %159, %v141
  %v161 = vpop.permute.xlu0 %160
  %162 = vset.pattern.permute.xlu0 0
  %163 = vperm.xlu0 %162, %v142
  %v164 = vpop.permute.xlu0 %163
  %165 = vset.pattern.permute.xlu0 0
  %166 = vperm.xlu0 %165, %v143
  %v167 = vpop.permute.xlu0 %166
  %168 = vset.pattern.permute.xlu0 0
  %169 = vperm.xlu0 %168, %v144
  %v170 = vpop.permute.xlu0 %169
  %171 = vset.pattern.permute.xlu0 0
  %172 = vperm.xlu0 %171, %v145
  %v173 = vpop.permute.xlu0 %172
  %174 = vset.pattern.permute.xlu0 0
  %175 = vperm.xlu0 %174, %v146
  %v176 = vpop.permute.xlu0 %175
  %177 = vset.pattern.permute.xlu0 0
  %178 = vperm.xlu0 %177, %v147
  %v179 = vpop.permute.xlu0 %178
  %180 = vset.pattern.permute.xlu0 0
  %181 = vperm.xlu0 %180, %v148
  %v182 = vpop.permute.xlu0 %181
  %183 = vset.pattern.permute.xlu0 0
  %184 = vperm.xlu0 %183, %v149
  %v185 = vpop.permute.xlu0 %184
  %186 = vset.pattern.permute.xlu0 0
  %187 = vperm.xlu0 %186, %v150
  %v188 = vpop.permute.xlu0 %187
  %189 = vset.pattern.permute.xlu0 0
  %190 = vperm.xlu0 %189, %v151
  %v191 = vpop.permute.xlu0 %190
  %192 = vset.pattern.permute.xlu0 0
  %193 = vperm.xlu0 %192, %v152
  %v194 = vpop.permute.xlu0 %193
  %195 = vset.pattern.permute.xlu0 0
  %196 = vperm.xlu0 %195, %v153
  %v197 = vpop.permute.xlu0 %196
  %198 = vset.pattern.permute.xlu0 0
  %199 = vperm.xlu0 %198, %v154
  %v200 = vpop.permute.xlu0 %199
  %201 = vset.pattern.permute.xlu0 0
  %202 = vperm.xlu0 %201, %v155
  %v203 = vpop.permute.xlu0 %202
  %vm204 = vcmp.eq.s32.totalorder %v35, %v158
  %vm205 = vcmp.eq.s32.totalorder %v35, %v161
  %vm206 = vcmp.eq.s32.totalorder %v35, %v164
  %vm207 = vcmp.eq.s32.totalorder %v35, %v167
  %vm208 = vcmp.eq.s32.totalorder %v35, %v170
  %vm209 = vcmp.eq.s32.totalorder %v35, %v173
  %vm210 = vcmp.eq.s32.totalorder %v35, %v176
  %vm211 = vcmp.eq.s32.totalorder %v35, %v179
  %vm212 = vcmp.eq.s32.totalorder %v35, %v182
  %vm213 = vcmp.eq.s32.totalorder %v35, %v185
  %vm214 = vcmp.eq.s32.totalorder %v35, %v188
  %vm215 = vcmp.eq.s32.totalorder %v35, %v191
  %vm216 = vcmp.eq.s32.totalorder %v35, %v194
  %vm217 = vcmp.eq.s32.totalorder %v35, %v197
  %vm218 = vcmp.eq.s32.totalorder %v35, %v200
  %vm219 = vcmp.eq.s32.totalorder %v35, %v203
  %v220 = vsel %vm204, 1.0, 0.0
  %v221 = vsel %vm205, 1.0, 0.0
  %v222 = vsel %vm206, 1.0, 0.0
  %v223 = vsel %vm207, 1.0, 0.0
  %v224 = vsel %vm208, 1.0, 0.0
  %v225 = vsel %vm209, 1.0, 0.0
  %v226 = vsel %vm210, 1.0, 0.0
  %v227 = vsel %vm211, 1.0, 0.0
  %v228 = vsel %vm212, 1.0, 0.0
  %v229 = vsel %vm213, 1.0, 0.0
  %v230 = vsel %vm214, 1.0, 0.0
  %v231 = vsel %vm215, 1.0, 0.0
  %v232 = vsel %vm216, 1.0, 0.0
  %v233 = vsel %vm217, 1.0, 0.0
  %v234 = vsel %vm218, 1.0, 0.0
  %v235 = vsel %vm219, 1.0, 0.0
  %v236 = vpack.c.bf16 %v221, %v220
  %v237 = vpack.c.bf16 %v223, %v222
  %v238 = vpack.c.bf16 %v225, %v224
  %v239 = vpack.c.bf16 %v227, %v226
  %v240 = vpack.c.bf16 %v229, %v228
  %v241 = vpack.c.bf16 %v231, %v230
  %v242 = vpack.c.bf16 %v233, %v232
  %v243 = vpack.c.bf16 %v235, %v234
  %v244 = vld [vmem:[%s2] sm:$0xf]
  %v245 = vld [vmem:[%s2 + $0x4] sm:$0xf]
  %v246 = vld [vmem:[%s2 + $0x8] sm:$0xf]
  %v247 = vld [vmem:[%s2 + $0xc] sm:$0xf]
  %v252 = vunpack.c.l.b16 %v244
  %v253 = vunpack.c.l.b16 %v245
  %v254 = vunpack.c.l.b16 %v246
  %v255 = vunpack.c.l.b16 %v247
  %v256 = vpack.c.b16 %v253, %v252
  %v257 = vpack.c.b16 %v255, %v254
  %vm260 = vcmask 261120
  %v262 = vsel %vm260, %v132, 0
  %v265 = vsel %vm260, %v133, 0
  %v268 = vsel %vm260, %v134, 0
  %v271 = vsel %vm260, %v135, 0
  %v274 = vsel %vm260, %v136, 0
  %v277 = vsel %vm260, %v137, 0
  %v280 = vsel %vm260, %v138, 0
  %v283 = vsel %vm260, %v139, 0
  %285 = vmatprep.subr.bf16.mxu0 0
  %286 = vmatpush1.bf16.msra.mxu0 0
  %287 = vmatprep.subr.bf16.mxu0 0
  %288 = vmatpush1.bf16.msra.mxu0 0
  %289 = vmatprep.subr.bf16.mxu0 0
  %290 = vmatpush1.bf16.msra.mxu0 0
  %291 = vmatprep.subr.bf16.mxu0 0
  %292 = vmatpush1.bf16.msra.mxu0 0
  %293 = vmatprep.subr.bf16.mxu0 0
  %294 = vmatpush1.bf16.msra.mxu0 0
  %295 = vmatprep.subr.bf16.mxu0 0
  %296 = vmatpush1.bf16.msra.mxu0 0
  %297 = vmatprep.subr.bf16.mxu0 0
  %298 = vmatpush1.bf16.msra.mxu0 %v257
  %299 = vmatprep.subr.bf16.mxu0 0
  %300 = vmatpush1.bf16.msra.mxu0 %v256
  %301 = vmatprep.subr.bf16.mxu0 0
  %302 = vmatpush2.bf16.msra.mxu0 0
  %303 = vmatprep.subr.bf16.mxu0 0
  %304 = vmatpush2.bf16.msra.mxu0 0
  %305 = vmatprep.subr.bf16.mxu0 0
  %306 = vmatpush2.bf16.msra.mxu0 0
  %307 = vmatprep.subr.bf16.mxu0 0
  %308 = vmatpush2.bf16.msra.mxu0 0
  %309 = vmatprep.subr.bf16.mxu0 0
  %310 = vmatpush2.bf16.msra.mxu0 0
  %311 = vmatprep.subr.bf16.mxu0 0
  %312 = vmatpush2.bf16.msra.mxu0 0
  %313 = vmatprep.subr.bf16.mxu0 0
  %314 = vmatpush2.bf16.msra.mxu0 0
  %315 = vmatprep.subr.bf16.mxu0 0
  %316 = vmatpush2.bf16.msra.mxu0 0
  %317 = vmatprep.mubr.bf16.mxu0 0
  %318 = vmatmul.mubr.bf16.gmra.mxu0 %v262
  %v319 = vpop.f32.mrf.mxu0
  %v320 = vadd.f32 0.0, %v319
  %v321 = vpop.f32.mrf.mxu0
  %v322 = vpop.f32.mrf.mxu0
  %v323 = vadd.f32 0.0, %v322
  %v324 = vpop.f32.mrf.mxu0
  %325 = vmatprep.mubr.bf16.mxu0 0
  %326 = vmatmul.mubr.bf16.gmra.mxu0 %v265
  %v327 = vpop.f32.mrf.mxu0
  %v328 = vadd.f32 0.0, %v327
  %v329 = vpop.f32.mrf.mxu0
  %v330 = vpop.f32.mrf.mxu0
  %v331 = vadd.f32 0.0, %v330
  %v332 = vpop.f32.mrf.mxu0
  %333 = vmatprep.mubr.bf16.mxu0 0
  %334 = vmatmul.mubr.bf16.gmra.mxu0 %v268
  %v335 = vpop.f32.mrf.mxu0
  %v336 = vadd.f32 0.0, %v335
  %v337 = vpop.f32.mrf.mxu0
  %v338 = vpop.f32.mrf.mxu0
  %v339 = vadd.f32 0.0, %v338
  %v340 = vpop.f32.mrf.mxu0
  %341 = vmatprep.mubr.bf16.mxu0 0
  %342 = vmatmul.mubr.bf16.gmra.mxu0 %v271
  %v343 = vpop.f32.mrf.mxu0
  %v344 = vadd.f32 0.0, %v343
  %v345 = vpop.f32.mrf.mxu0
  %v346 = vpop.f32.mrf.mxu0
  %v347 = vadd.f32 0.0, %v346
  %v348 = vpop.f32.mrf.mxu0
  %349 = vmatprep.mubr.bf16.mxu0 0
  %350 = vmatmul.mubr.bf16.gmra.mxu0 %v274
  %v351 = vpop.f32.mrf.mxu0
  %v352 = vadd.f32 0.0, %v351
  %v353 = vpop.f32.mrf.mxu0
  %v354 = vpop.f32.mrf.mxu0
  %v355 = vadd.f32 0.0, %v354
  %v356 = vpop.f32.mrf.mxu0
  %357 = vmatprep.mubr.bf16.mxu0 0
  %358 = vmatmul.mubr.bf16.gmra.mxu0 %v277
  %v359 = vpop.f32.mrf.mxu0
  %v360 = vadd.f32 0.0, %v359
  %v361 = vpop.f32.mrf.mxu0
  %v362 = vpop.f32.mrf.mxu0
  %v363 = vadd.f32 0.0, %v362
  %v364 = vpop.f32.mrf.mxu0
  %365 = vmatprep.mubr.bf16.mxu0 0
  %366 = vmatmul.mubr.bf16.gmra.mxu0 %v280
  %v367 = vpop.f32.mrf.mxu0
  %v368 = vadd.f32 0.0, %v367
  %v369 = vpop.f32.mrf.mxu0
  %v370 = vpop.f32.mrf.mxu0
  %v371 = vadd.f32 0.0, %v370
  %v372 = vpop.f32.mrf.mxu0
  %373 = vmatprep.mubr.bf16.mxu0 0
  %374 = vmatmul.mubr.bf16.gmra.mxu0 %v283
  %v375 = vpop.f32.mrf.mxu0
  %v376 = vadd.f32 0.0, %v375
  %v377 = vpop.f32.mrf.mxu0
  %v378 = vpop.f32.mrf.mxu0
  %v379 = vadd.f32 0.0, %v378
  %v380 = vpop.f32.mrf.mxu0
  %381 = vdwg.mxu0
  %v382 = vld [vmem:[%s3] sm:$0xf]
  %v383 = vld [vmem:[%s3 + $0x4] sm:$0xf]
  %v384 = vld [vmem:[%s3 + $0x8] sm:$0xf]
  %v385 = vld [vmem:[%s3 + $0xc] sm:$0xf]
  %v386 = vld [vmem:[%s3 + $0x10] sm:$0xf]
  %v387 = vld [vmem:[%s3 + $0x14] sm:$0xf]
  %v394 = vunpack.c.l.b16 %v382
  %v395 = vunpack.c.l.b16 %v383
  %v396 = vunpack.c.l.b16 %v384
  %v397 = vunpack.c.l.b16 %v385
  %v398 = vunpack.c.l.b16 %v386
  %v399 = vunpack.c.l.b16 %v387
  %v400 = vpack.c.b16 %v395, %v394
  %v401 = vpack.c.b16 %v397, %v396
  %v402 = vpack.c.b16 %v399, %v398
  %vm406 = vcmask 392192
  %v408 = vsel %vm406, %v236, 0
  %v411 = vsel %vm406, %v237, 0
  %v414 = vsel %vm406, %v238, 0
  %v417 = vsel %vm406, %v239, 0
  %v420 = vsel %vm406, %v240, 0
  %v423 = vsel %vm406, %v241, 0
  %v426 = vsel %vm406, %v242, 0
  %v429 = vsel %vm406, %v243, 0
  %431 = vmatprep.subr.bf16.mxu0 0
  %432 = vmatpush1.bf16.msra.mxu0 0
  %433 = vmatprep.subr.bf16.mxu0 0
  %434 = vmatpush1.bf16.msra.mxu0 0
  %435 = vmatprep.subr.bf16.mxu0 0
  %436 = vmatpush1.bf16.msra.mxu0 0
  %437 = vmatprep.subr.bf16.mxu0 0
  %438 = vmatpush1.bf16.msra.mxu0 0
  %439 = vmatprep.subr.bf16.mxu0 0
  %440 = vmatpush1.bf16.msra.mxu0 0
  %441 = vmatprep.subr.bf16.mxu0 0
  %442 = vmatpush1.bf16.msra.mxu0 %v402
  %443 = vmatprep.subr.bf16.mxu0 0
  %444 = vmatpush1.bf16.msra.mxu0 %v401
  %445 = vmatprep.subr.bf16.mxu0 0
  %446 = vmatpush1.bf16.msra.mxu0 %v400
  %447 = vmatprep.subr.bf16.mxu0 0
  %448 = vmatpush2.bf16.msra.mxu0 0
  %449 = vmatprep.subr.bf16.mxu0 0
  %450 = vmatpush2.bf16.msra.mxu0 0
  %451 = vmatprep.subr.bf16.mxu0 0
  %452 = vmatpush2.bf16.msra.mxu0 0
  %453 = vmatprep.subr.bf16.mxu0 0
  %454 = vmatpush2.bf16.msra.mxu0 0
  %455 = vmatprep.subr.bf16.mxu0 0
  %456 = vmatpush2.bf16.msra.mxu0 0
  %457 = vmatprep.subr.bf16.mxu0 0
  %458 = vmatpush2.bf16.msra.mxu0 0
  %459 = vmatprep.subr.bf16.mxu0 0
  %460 = vmatpush2.bf16.msra.mxu0 0
  %461 = vmatprep.subr.bf16.mxu0 0
  %462 = vmatpush2.bf16.msra.mxu0 0
  %463 = vmatprep.mubr.bf16.mxu0 0
  %464 = vmatmul.mubr.bf16.gmra.mxu0 %v408
  %v465 = vpop.f32.mrf.mxu0
  %v466 = vadd.f32 0.0, %v465
  %v467 = vpop.f32.mrf.mxu0
  %v468 = vpop.f32.mrf.mxu0
  %v469 = vadd.f32 0.0, %v468
  %v470 = vpop.f32.mrf.mxu0
  %471 = vmatprep.mubr.bf16.mxu0 0
  %472 = vmatmul.mubr.bf16.gmra.mxu0 %v411
  %v473 = vpop.f32.mrf.mxu0
  %v474 = vadd.f32 0.0, %v473
  %v475 = vpop.f32.mrf.mxu0
  %v476 = vpop.f32.mrf.mxu0
  %v477 = vadd.f32 0.0, %v476
  %v478 = vpop.f32.mrf.mxu0
  %479 = vmatprep.mubr.bf16.mxu0 0
  %480 = vmatmul.mubr.bf16.gmra.mxu0 %v414
  %v481 = vpop.f32.mrf.mxu0
  %v482 = vadd.f32 0.0, %v481
  %v483 = vpop.f32.mrf.mxu0
  %v484 = vpop.f32.mrf.mxu0
  %v485 = vadd.f32 0.0, %v484
  %v486 = vpop.f32.mrf.mxu0
  %487 = vmatprep.mubr.bf16.mxu0 0
  %488 = vmatmul.mubr.bf16.gmra.mxu0 %v417
  %v489 = vpop.f32.mrf.mxu0
  %v490 = vadd.f32 0.0, %v489
  %v491 = vpop.f32.mrf.mxu0
  %v492 = vpop.f32.mrf.mxu0
  %v493 = vadd.f32 0.0, %v492
  %v494 = vpop.f32.mrf.mxu0
  %495 = vmatprep.mubr.bf16.mxu0 0
  %496 = vmatmul.mubr.bf16.gmra.mxu0 %v420
  %v497 = vpop.f32.mrf.mxu0
  %v498 = vadd.f32 0.0, %v497
  %v499 = vpop.f32.mrf.mxu0
  %v500 = vpop.f32.mrf.mxu0
  %v501 = vadd.f32 0.0, %v500
  %v502 = vpop.f32.mrf.mxu0
  %503 = vmatprep.mubr.bf16.mxu0 0
  %504 = vmatmul.mubr.bf16.gmra.mxu0 %v423
  %v505 = vpop.f32.mrf.mxu0
  %v506 = vadd.f32 0.0, %v505
  %v507 = vpop.f32.mrf.mxu0
  %v508 = vpop.f32.mrf.mxu0
  %v509 = vadd.f32 0.0, %v508
  %v510 = vpop.f32.mrf.mxu0
  %511 = vmatprep.mubr.bf16.mxu0 0
  %512 = vmatmul.mubr.bf16.gmra.mxu0 %v426
  %v513 = vpop.f32.mrf.mxu0
  %v514 = vadd.f32 0.0, %v513
  %v515 = vpop.f32.mrf.mxu0
  %v516 = vpop.f32.mrf.mxu0
  %v517 = vadd.f32 0.0, %v516
  %v518 = vpop.f32.mrf.mxu0
  %519 = vmatprep.mubr.bf16.mxu0 0
  %520 = vmatmul.mubr.bf16.gmra.mxu0 %v429
  %v521 = vpop.f32.mrf.mxu0
  %v522 = vadd.f32 0.0, %v521
  %v523 = vpop.f32.mrf.mxu0
  %v524 = vpop.f32.mrf.mxu0
  %v525 = vadd.f32 0.0, %v524
  %v526 = vpop.f32.mrf.mxu0
  %527 = vdwg.mxu0
  %v528 = vpack.c.bf16 %v323, %v320
  %v529 = vpack.c.bf16 %v331, %v328
  %v530 = vpack.c.bf16 %v339, %v336
  %v531 = vpack.c.bf16 %v347, %v344
  %v532 = vpack.c.bf16 %v355, %v352
  %v533 = vpack.c.bf16 %v363, %v360
  %v534 = vpack.c.bf16 %v371, %v368
  %v535 = vpack.c.bf16 %v379, %v376
  %v536 = vld [vmem:[%s4] sm:$0xf]
  %v537 = vld [vmem:[%s4 + $0x4] sm:$0xf]
  %v538 = vld [vmem:[%s4 + $0x8] sm:$0xf]
  %v539 = vld [vmem:[%s4 + $0xc] sm:$0xf]
  %v540 = vld [vmem:[%s4 + $0x10] sm:$0xf]
  %v541 = vld [vmem:[%s4 + $0x14] sm:$0xf]
  %v542 = vld [vmem:[%s4 + $0x18] sm:$0xf]
  %v543 = vld [vmem:[%s4 + $0x1c] sm:$0xf]
  %v544 = vpack.c.bf16 %v469, %v466
  %v545 = vpack.c.bf16 %v477, %v474
  %v546 = vpack.c.bf16 %v485, %v482
  %v547 = vpack.c.bf16 %v493, %v490
  %v548 = vpack.c.bf16 %v501, %v498
  %v549 = vpack.c.bf16 %v509, %v506
  %v550 = vpack.c.bf16 %v517, %v514
  %v551 = vpack.c.bf16 %v525, %v522
  %v552 = vld [vmem:[%s5] sm:$0xf]
  %v553 = vld [vmem:[%s5 + $0x4] sm:$0xf]
  %v554 = vld [vmem:[%s5 + $0x8] sm:$0xf]
  %v555 = vld [vmem:[%s5 + $0xc] sm:$0xf]
  %v556 = vld [vmem:[%s5 + $0x10] sm:$0xf]
  %v557 = vld [vmem:[%s5 + $0x14] sm:$0xf]
  %v558 = vld [vmem:[%s5 + $0x18] sm:$0xf]
  %v559 = vld [vmem:[%s5 + $0x1c] sm:$0xf]
  %v568 = vunpack.c.l.b16 %v552
  %v569 = vunpack.c.l.b16 %v553
  %v570 = vunpack.c.l.b16 %v554
  %v571 = vunpack.c.l.b16 %v555
  %v572 = vunpack.c.l.b16 %v556
  %v573 = vunpack.c.l.b16 %v557
  %v574 = vunpack.c.l.b16 %v558
  %v575 = vunpack.c.l.b16 %v559
  %v576 = vpack.c.b16 %v569, %v568
  %v577 = vpack.c.b16 %v571, %v570
  %v578 = vpack.c.b16 %v573, %v572
  %v579 = vpack.c.b16 %v575, %v574
  %vm584 = vcmask 523264
  %v586 = vsel %vm584, %v544, 0
  %v589 = vsel %vm584, %v545, 0
  %v592 = vsel %vm584, %v546, 0
  %v595 = vsel %vm584, %v547, 0
  %v598 = vsel %vm584, %v548, 0
  %v601 = vsel %vm584, %v549, 0
  %v604 = vsel %vm584, %v550, 0
  %v607 = vsel %vm584, %v551, 0
  %609 = vmatprep.subr.bf16.mxu0 0
  %610 = vmatpush1.bf16.msra.mxu0 0
  %611 = vmatprep.subr.bf16.mxu0 0
  %612 = vmatpush1.bf16.msra.mxu0 0
  %613 = vmatprep.subr.bf16.mxu0 0
  %614 = vmatpush1.bf16.msra.mxu0 0
  %615 = vmatprep.subr.bf16.mxu0 0
  %616 = vmatpush1.bf16.msra.mxu0 0
  %617 = vmatprep.subr.bf16.mxu0 0
  %618 = vmatpush1.bf16.msra.mxu0 %v579
  %619 = vmatprep.subr.bf16.mxu0 0
  %620 = vmatpush1.bf16.msra.mxu0 %v578
  %621 = vmatprep.subr.bf16.mxu0 0
  %622 = vmatpush1.bf16.msra.mxu0 %v577
  %623 = vmatprep.subr.bf16.mxu0 0
  %624 = vmatpush1.bf16.msra.mxu0 %v576
  %625 = vmatprep.subr.bf16.mxu0 0
  %626 = vmatpush2.bf16.msra.mxu0 0
  %627 = vmatprep.subr.bf16.mxu0 0
  %628 = vmatpush2.bf16.msra.mxu0 0
  %629 = vmatprep.subr.bf16.mxu0 0
  %630 = vmatpush2.bf16.msra.mxu0 0
  %631 = vmatprep.subr.bf16.mxu0 0
  %632 = vmatpush2.bf16.msra.mxu0 0
  %633 = vmatprep.subr.bf16.mxu0 0
  %634 = vmatpush2.bf16.msra.mxu0 0
  %635 = vmatprep.subr.bf16.mxu0 0
  %636 = vmatpush2.bf16.msra.mxu0 0
  %637 = vmatprep.subr.bf16.mxu0 0
  %638 = vmatpush2.bf16.msra.mxu0 0
  %639 = vmatprep.subr.bf16.mxu0 0
  %640 = vmatpush2.bf16.msra.mxu0 0
  %641 = vmatprep.mubr.bf16.mxu0 0
  %642 = vmatmul.mubr.bf16.gmra.mxu0 %v586
  %v643 = vpop.f32.mrf.mxu0
  %v644 = vadd.f32 0.0, %v643
  %v645 = vpop.f32.mrf.mxu0
  %v646 = vpop.f32.mrf.mxu0
  %v647 = vadd.f32 0.0, %v646
  %v648 = vpop.f32.mrf.mxu0
  %649 = vmatprep.mubr.bf16.mxu0 0
  %650 = vmatmul.mubr.bf16.gmra.mxu0 %v589
  %v651 = vpop.f32.mrf.mxu0
  %v652 = vadd.f32 0.0, %v651
  %v653 = vpop.f32.mrf.mxu0
  %v654 = vpop.f32.mrf.mxu0
  %v655 = vadd.f32 0.0, %v654
  %v656 = vpop.f32.mrf.mxu0
  %657 = vmatprep.mubr.bf16.mxu0 0
  %658 = vmatmul.mubr.bf16.gmra.mxu0 %v592
  %v659 = vpop.f32.mrf.mxu0
  %v660 = vadd.f32 0.0, %v659
  %v661 = vpop.f32.mrf.mxu0
  %v662 = vpop.f32.mrf.mxu0
  %v663 = vadd.f32 0.0, %v662
  %v664 = vpop.f32.mrf.mxu0
  %665 = vmatprep.mubr.bf16.mxu0 0
  %666 = vmatmul.mubr.bf16.gmra.mxu0 %v595
  %v667 = vpop.f32.mrf.mxu0
  %v668 = vadd.f32 0.0, %v667
  %v669 = vpop.f32.mrf.mxu0
  %v670 = vpop.f32.mrf.mxu0
  %v671 = vadd.f32 0.0, %v670
  %v672 = vpop.f32.mrf.mxu0
  %673 = vmatprep.mubr.bf16.mxu0 0
  %674 = vmatmul.mubr.bf16.gmra.mxu0 %v598
  %v675 = vpop.f32.mrf.mxu0
  %v676 = vadd.f32 0.0, %v675
  %v677 = vpop.f32.mrf.mxu0
  %v678 = vpop.f32.mrf.mxu0
  %v679 = vadd.f32 0.0, %v678
  %v680 = vpop.f32.mrf.mxu0
  %681 = vmatprep.mubr.bf16.mxu0 0
  %682 = vmatmul.mubr.bf16.gmra.mxu0 %v601
  %v683 = vpop.f32.mrf.mxu0
  %v684 = vadd.f32 0.0, %v683
  %v685 = vpop.f32.mrf.mxu0
  %v686 = vpop.f32.mrf.mxu0
  %v687 = vadd.f32 0.0, %v686
  %v688 = vpop.f32.mrf.mxu0
  %689 = vmatprep.mubr.bf16.mxu0 0
  %690 = vmatmul.mubr.bf16.gmra.mxu0 %v604
  %v691 = vpop.f32.mrf.mxu0
  %v692 = vadd.f32 0.0, %v691
  %v693 = vpop.f32.mrf.mxu0
  %v694 = vpop.f32.mrf.mxu0
  %v695 = vadd.f32 0.0, %v694
  %v696 = vpop.f32.mrf.mxu0
  %697 = vmatprep.mubr.bf16.mxu0 0
  %698 = vmatmul.mubr.bf16.gmra.mxu0 %v607
  %v699 = vpop.f32.mrf.mxu0
  %v700 = vadd.f32 0.0, %v699
  %v701 = vpop.f32.mrf.mxu0
  %v702 = vpop.f32.mrf.mxu0
  %v703 = vadd.f32 0.0, %v702
  %v704 = vpop.f32.mrf.mxu0
  %705 = vdwg.mxu0
  %v714 = vunpack.c.l.b16 %v536
  %v715 = vunpack.c.l.b16 %v537
  %v716 = vunpack.c.l.b16 %v538
  %v717 = vunpack.c.l.b16 %v539
  %v718 = vunpack.c.l.b16 %v540
  %v719 = vunpack.c.l.b16 %v541
  %v720 = vunpack.c.l.b16 %v542
  %v721 = vunpack.c.l.b16 %v543
  %v722 = vpack.c.b16 %v715, %v714
  %v723 = vpack.c.b16 %v717, %v716
  %v724 = vpack.c.b16 %v719, %v718
  %v725 = vpack.c.b16 %v721, %v720
  %v731 = vsel %vm584, %v528, 0
  %v734 = vsel %vm584, %v529, 0
  %v737 = vsel %vm584, %v530, 0
  %v740 = vsel %vm584, %v531, 0
  %v743 = vsel %vm584, %v532, 0
  %v746 = vsel %vm584, %v533, 0
  %v749 = vsel %vm584, %v534, 0
  %v752 = vsel %vm584, %v535, 0
  %754 = vmatprep.subr.bf16.mxu0 0
  %755 = vmatpush1.bf16.msra.mxu0 0
  %756 = vmatprep.subr.bf16.mxu0 0
  %757 = vmatpush1.bf16.msra.mxu0 0
  %758 = vmatprep.subr.bf16.mxu0 0
  %759 = vmatpush1.bf16.msra.mxu0 0
  %760 = vmatprep.subr.bf16.mxu0 0
  %761 = vmatpush1.bf16.msra.mxu0 0
  %762 = vmatprep.subr.bf16.mxu0 0
  %763 = vmatpush1.bf16.msra.mxu0 %v725
  %764 = vmatprep.subr.bf16.mxu0 0
  %765 = vmatpush1.bf16.msra.mxu0 %v724
  %766 = vmatprep.subr.bf16.mxu0 0
  %767 = vmatpush1.bf16.msra.mxu0 %v723
  %768 = vmatprep.subr.bf16.mxu0 0
  %769 = vmatpush1.bf16.msra.mxu0 %v722
  %770 = vmatprep.subr.bf16.mxu0 0
  %771 = vmatpush2.bf16.msra.mxu0 0
  %772 = vmatprep.subr.bf16.mxu0 0
  %773 = vmatpush2.bf16.msra.mxu0 0
  %774 = vmatprep.subr.bf16.mxu0 0
  %775 = vmatpush2.bf16.msra.mxu0 0
  %776 = vmatprep.subr.bf16.mxu0 0
  %777 = vmatpush2.bf16.msra.mxu0 0
  %778 = vmatprep.subr.bf16.mxu0 0
  %779 = vmatpush2.bf16.msra.mxu0 0
  %780 = vmatprep.subr.bf16.mxu0 0
  %781 = vmatpush2.bf16.msra.mxu0 0
  %782 = vmatprep.subr.bf16.mxu0 0
  %783 = vmatpush2.bf16.msra.mxu0 0
  %784 = vmatprep.subr.bf16.mxu0 0
  %785 = vmatpush2.bf16.msra.mxu0 0
  %786 = vmatprep.mubr.bf16.mxu0 0
  %787 = vmatmul.mubr.bf16.gmra.mxu0 %v731
  %v788 = vpop.f32.mrf.mxu0
  %v789 = vadd.f32 %v644, %v788
  %v790 = vpop.f32.mrf.mxu0
  %v791 = vpop.f32.mrf.mxu0
  %v792 = vadd.f32 %v647, %v791
  %v793 = vpop.f32.mrf.mxu0
  %794 = vmatprep.mubr.bf16.mxu0 0
  %795 = vmatmul.mubr.bf16.gmra.mxu0 %v734
  %v796 = vpop.f32.mrf.mxu0
  %v797 = vadd.f32 %v652, %v796
  %v798 = vpop.f32.mrf.mxu0
  %v799 = vpop.f32.mrf.mxu0
  %v800 = vadd.f32 %v655, %v799
  %v801 = vpop.f32.mrf.mxu0
  %802 = vmatprep.mubr.bf16.mxu0 0
  %803 = vmatmul.mubr.bf16.gmra.mxu0 %v737
  %v804 = vpop.f32.mrf.mxu0
  %v805 = vadd.f32 %v660, %v804
  %v806 = vpop.f32.mrf.mxu0
  %v807 = vpop.f32.mrf.mxu0
  %v808 = vadd.f32 %v663, %v807
  %v809 = vpop.f32.mrf.mxu0
  %810 = vmatprep.mubr.bf16.mxu0 0
  %811 = vmatmul.mubr.bf16.gmra.mxu0 %v740
  %v812 = vpop.f32.mrf.mxu0
  %v813 = vadd.f32 %v668, %v812
  %v814 = vpop.f32.mrf.mxu0
  %v815 = vpop.f32.mrf.mxu0
  %v816 = vadd.f32 %v671, %v815
  %v817 = vpop.f32.mrf.mxu0
  %818 = vmatprep.mubr.bf16.mxu0 0
  %819 = vmatmul.mubr.bf16.gmra.mxu0 %v743
  %v820 = vpop.f32.mrf.mxu0
  %v821 = vadd.f32 %v676, %v820
  %v822 = vpop.f32.mrf.mxu0
  %v823 = vpop.f32.mrf.mxu0
  %v824 = vadd.f32 %v679, %v823
  %v825 = vpop.f32.mrf.mxu0
  %826 = vmatprep.mubr.bf16.mxu0 0
  %827 = vmatmul.mubr.bf16.gmra.mxu0 %v746
  %v828 = vpop.f32.mrf.mxu0
  %v829 = vadd.f32 %v684, %v828
  %v830 = vpop.f32.mrf.mxu0
  %v831 = vpop.f32.mrf.mxu0
  %v832 = vadd.f32 %v687, %v831
  %v833 = vpop.f32.mrf.mxu0
  %834 = vmatprep.mubr.bf16.mxu0 0
  %835 = vmatmul.mubr.bf16.gmra.mxu0 %v749
  %v836 = vpop.f32.mrf.mxu0
  %v837 = vadd.f32 %v692, %v836
  %v838 = vpop.f32.mrf.mxu0
  %v839 = vpop.f32.mrf.mxu0
  %v840 = vadd.f32 %v695, %v839
  %v841 = vpop.f32.mrf.mxu0
  %842 = vmatprep.mubr.bf16.mxu0 0
  %843 = vmatmul.mubr.bf16.gmra.mxu0 %v752
  %v844 = vpop.f32.mrf.mxu0
  %v845 = vadd.f32 %v700, %v844
  %v846 = vpop.f32.mrf.mxu0
  %v847 = vpop.f32.mrf.mxu0
  %v848 = vadd.f32 %v703, %v847
  %v849 = vpop.f32.mrf.mxu0
  %850 = vdwg.mxu0
  %v851 = vld [vmem:[%s6] sm:$0x1]
  %v853 = vlaneseq
  %v854 = vshrl.u32 %v853, 7
  %v855 = vsub.s32 0, %v854
  %v856 = vrot.slane %v851, %v855
  %v858 = vadd.f32 %v789, %v856
  %v859 = vadd.f32 %v792, %v856
  %v860 = vadd.f32 %v797, %v856
  %v861 = vadd.f32 %v800, %v856
  %v862 = vadd.f32 %v805, %v856
  %v863 = vadd.f32 %v808, %v856
  %v864 = vadd.f32 %v813, %v856
  %v865 = vadd.f32 %v816, %v856
  %v866 = vadd.f32 %v821, %v856
  %v867 = vadd.f32 %v824, %v856
  %v868 = vadd.f32 %v829, %v856
  %v869 = vadd.f32 %v832, %v856
  %v870 = vadd.f32 %v837, %v856
  %v871 = vadd.f32 %v840, %v856
  %v872 = vadd.f32 %v845, %v856
  %v873 = vadd.f32 %v848, %v856
  %v874 = vmax.f32 %v858, 0.0
  %v875 = vmax.f32 %v859, 0.0
  %v876 = vmax.f32 %v860, 0.0
  %v877 = vmax.f32 %v861, 0.0
  %v878 = vmax.f32 %v862, 0.0
  %v879 = vmax.f32 %v863, 0.0
  %v880 = vmax.f32 %v864, 0.0
  %v881 = vmax.f32 %v865, 0.0
  %v882 = vmax.f32 %v866, 0.0
  %v883 = vmax.f32 %v867, 0.0
  %v884 = vmax.f32 %v868, 0.0
  %v885 = vmax.f32 %v869, 0.0
  %v886 = vmax.f32 %v870, 0.0
  %v887 = vmax.f32 %v871, 0.0
  %v888 = vmax.f32 %v872, 0.0
  %v889 = vmax.f32 %v873, 0.0
  %v890 = vld [vmem:[%s7] sm:$0x1]
  %v891 = vpack.c.bf16 %v875, %v874
  %v892 = vpack.c.bf16 %v877, %v876
  %v893 = vpack.c.bf16 %v879, %v878
  %v894 = vpack.c.bf16 %v881, %v880
  %v895 = vpack.c.bf16 %v883, %v882
  %v896 = vpack.c.bf16 %v885, %v884
  %v897 = vpack.c.bf16 %v887, %v886
  %v898 = vpack.c.bf16 %v889, %v888
  %s899 = sld [smem:[#allocation2]]
  %v900 = vstv %s899
  %901 = vmatprep.subr.bf16.mxu0 0
  %902 = vmatpush1.bf16.xpose.msra.mxu0 %v898
  %903 = vmatprep.subr.bf16.mxu0 0
  %904 = vmatpush1.bf16.xpose.msra.mxu0 %v897
  %905 = vmatprep.subr.bf16.mxu0 0
  %906 = vmatpush1.bf16.xpose.msra.mxu0 %v896
  %907 = vmatprep.subr.bf16.mxu0 0
  %908 = vmatpush1.bf16.xpose.msra.mxu0 %v895
  %909 = vmatprep.subr.bf16.mxu0 0
  %910 = vmatpush1.bf16.xpose.msra.mxu0 %v894
  %911 = vmatprep.subr.bf16.mxu0 0
  %912 = vmatpush1.bf16.xpose.msra.mxu0 %v893
  %913 = vmatprep.subr.bf16.mxu0 0
  %914 = vmatpush1.bf16.xpose.msra.mxu0 %v892
  %915 = vmatprep.subr.bf16.mxu0 0
  %916 = vmatpush1.bf16.xpose.msra.mxu0 %v891
  %917 = vmatprep.subr.bf16.mxu0 0
  %918 = vmatpush2.bf16.xpose.msra.mxu0 0
  %919 = vmatprep.subr.bf16.mxu0 0
  %920 = vmatpush2.bf16.xpose.msra.mxu0 0
  %921 = vmatprep.subr.bf16.mxu0 0
  %922 = vmatpush2.bf16.xpose.msra.mxu0 0
  %923 = vmatprep.subr.bf16.mxu0 0
  %924 = vmatpush2.bf16.xpose.msra.mxu0 0
  %925 = vmatprep.subr.bf16.mxu0 0
  %926 = vmatpush2.bf16.xpose.msra.mxu0 0
  %927 = vmatprep.subr.bf16.mxu0 0
  %928 = vmatpush2.bf16.xpose.msra.mxu0 0
  %929 = vmatprep.subr.bf16.mxu0 0
  %930 = vmatpush2.bf16.xpose.msra.mxu0 0
  %931 = vmatprep.subr.bf16.mxu0 0
  %932 = vmatpush2.bf16.xpose.msra.mxu0 0
  %933 = vmatprep.mubr.bf16.mxu0 0
  %934 = vmatmul.mubr.bf16.gmra.mxu0 %v890
  %v935 = vpop.f32.mrf.mxu0
  %v936 = vadd.f32 %v900, %v935
  %v937 = vpop.f32.mrf.mxu0
  %v938 = vpop.f32.mrf.mxu0
  %v939 = vpop.f32.mrf.mxu0
  %940 = vdwg.mxu0
  %941 = vst [vmem:[%s9] sm:$0x1] %v936
  // Predicated region
  $region38: #{recommendation_nn_forward.1} parent=0 // pred_check
    _
  $region39: #{recommendation_nn_forward.1} parent=0 // pred_check_branch
    %943 = sbr.rel (0) target = $region41
  $region40: #{recommendation_nn_forward.1} parent=0 // pred_region
    _
  $region41: #{recommendation_nn_forward.1} parent=0 // pred_fallthru
    _
  // Predicated region
  $region42: #{recommendation_nn_forward.1} parent=0 // pred_check
    _
  $region43: #{recommendation_nn_forward.1} parent=0 // pred_check_branch
    %945 = sbr.rel (0) target = $region45
  $region44: #{recommendation_nn_forward.1} parent=0 // pred_region
    _
  $region45: #{recommendation_nn_forward.1} parent=0 // pred_fallthru
    _

</llo_original>
